<compile_context>
chip_gen: v7x
topology: tpu7x:2x2x1
jax: 0.10.0
libtpu: 0.0.40
codegen_flags: <defaults>
</compile_context>

<pallas_src>
import math
import jax
import jax.numpy as jnp
from jax.experimental import pallas as pl
from jax.experimental.pallas import tpu as pltpu

_LANE = 128


# ---------------------------------------------------------------------------
# Parameter initialization (deterministic, mirrors the PyTorch __init__):
#   hidden Linear layers : kaiming_normal_ ("he normal"), bias = 0
#   mean / log_std layers: xavier_uniform_,               bias = 0
# Weights are stored (in_features, out_features): y = x @ W + b.
# ---------------------------------------------------------------------------
def init_transfer_function_params(key, obs_dim, act_simple_dim, hidden_sizes,
                                  act_complex_dim):
    sizes = [obs_dim + act_simple_dim] + list(hidden_sizes)
    params = {"hidden": [], "mean": None, "log_std": None}

    for in_size, out_size in zip(sizes[:-1], sizes[1:]):
        key, k = jax.random.split(key)
        std = math.sqrt(2.0 / in_size)          # kaiming_normal_, fan_in
        w = std * jax.random.normal(k, (in_size, out_size), dtype=jnp.float32)
        b = jnp.zeros((1, out_size), dtype=jnp.float32)
        params["hidden"].append((w, b))

    last = sizes[-1]
    for name in ("mean", "log_std"):
        key, k = jax.random.split(key)
        bound = math.sqrt(6.0 / (last + act_complex_dim))   # xavier_uniform_
        w = jax.random.uniform(k, (last, act_complex_dim), dtype=jnp.float32,
                               minval=-bound, maxval=bound)
        b = jnp.zeros((1, act_complex_dim), dtype=jnp.float32)
        params[name] = (w, b)

    return params


# ---------------------------------------------------------------------------
# Kernel (transposed data flow, activations kept lane-dense over the batch).
# refs: [x_T, W0_T .. W_{n-1}_T, W_head_T, b_packed, out]
#   x_T      : (in_dim, tile_b)          bf16
#   W_l_T    : (out_l, in_l)             bf16   (resident)
#   W_head_T : (2*d_out, last_hidden)    bf16   (resident, mean|log_std fused)
#   b_packed : (max_out, n_layers+1)     f32    (one column per layer)
#   out      : (2*d_out, tile_b)         f32
# ---------------------------------------------------------------------------
def _make_kernel(hidden_sizes, d_out):
    n_hidden = len(hidden_sizes)

    def kernel(*refs):
        x_ref = refs[0]
        w_refs = refs[1:1 + n_hidden]
        wh_ref = refs[1 + n_hidden]
        b_ref = refs[2 + n_hidden]
        out_ref = refs[-1]

        h = x_ref[...]                                   # bf16 (in_dim, tile_b)
        for li in range(n_hidden):
            out_sz = hidden_sizes[li]
            z = jnp.dot(w_refs[li][...], h,
                        preferred_element_type=jnp.float32)
            z = z + b_ref[:out_sz, li:li + 1]            # f32 bias column
            h = jnp.maximum(z, 0.0).astype(jnp.bfloat16)

        # Fused head: rows [0, d_out) = mean, rows [d_out, 2*d_out) = log_std.
        head = jnp.dot(wh_ref[...], h, preferred_element_type=jnp.float32)
        head = head + b_ref[:2 * d_out, n_hidden:n_hidden + 1]

        # clamp only the log_std rows (torch.clamp(-20, 2)); (2*d_out, 1) iota
        # broadcasts over the lane (batch) dimension.
        row = jax.lax.broadcasted_iota(jnp.int32, (2 * d_out, 1), 0)
        out_ref[...] = jnp.where(row < d_out, head,
                                 jnp.clip(head, -20.0, 2.0))

    return kernel


def _pick_batch_tile(batch, in_dim, hidden_sizes, d_out):
    """Batch-tile (lane) size: as large as the VMEM budget allows, but always
    >= 2 grid steps once batch > 128 so v7x megacore can shard the grid."""
    def pad8(n):
        return max(8, ((n + 7) // 8) * 8)

    # per-column VMEM bytes: double-buffered bf16 input + f32 output blocks,
    # plus a few f32 working copies of the widest activation.
    per_col = (2 * 2 * pad8(in_dim)
               + 2 * 4 * pad8(2 * d_out)
               + 3 * 4 * pad8(max(hidden_sizes)))
    budget = 12 * 1024 * 1024    # comfortably below scoped-VMEM defaults (v5e/v6e/v7x)
    cap = max(_LANE, min(8192, (budget // per_col) // _LANE * _LANE))

    if batch <= _LANE:
        return _LANE
    want = ((pl.cdiv(batch, 2) + _LANE - 1) // _LANE) * _LANE   # >= 2 tiles
    return min(cap, want)


def transfer_function_forward(params, observation, action):
    """Mirrors TransferFunction.forward: returns (mean, log_std)."""
    observation = jnp.asarray(observation)
    action = jnp.asarray(action)
    if action.ndim != observation.ndim:          # PyTorch glue
        action = action[..., None]
    if observation.ndim == 0:
        observation = observation[..., None]

    obs = observation.astype(jnp.float32)
    act = action.astype(jnp.float32)

    lead = obs.shape[:-1]
    obs2 = obs.reshape((-1, obs.shape[-1]))
    act2 = act.reshape((-1, act.shape[-1]))
    batch = obs2.shape[0]

    hidden = params["hidden"]
    hidden_sizes = [w.shape[1] for (w, _) in hidden]
    wm, bm = params["mean"]
    ws, bs = params["log_std"]
    d_out = wm.shape[1]
    in_dim = obs2.shape[1] + act2.shape[1]

    tile_b = _pick_batch_tile(batch, in_dim, hidden_sizes, d_out)
    n_tiles = pl.cdiv(batch, tile_b)
    bp = n_tiles * tile_b

    # Lane-dense bf16 input slab (in_dim, padded_batch); zero-pad extra columns.
    x = jnp.concatenate([obs2, act2], axis=-1)
    if bp != batch:
        x = jnp.pad(x, ((0, bp - batch), (0, 0)))
    x_t = x.T.astype(jnp.bfloat16)

    # Transposed bf16 weights (out, in): kernel computes h_T = W_T @ x_T.
    w_ts = [w.T.astype(jnp.bfloat16) for (w, _) in hidden]
    wh_t = jnp.concatenate([wm, ws], axis=1).T.astype(jnp.bfloat16)

    # Pack all biases (f32) into one small tile: one column per layer.
    max_out = max(hidden_sizes + [2 * d_out])
    cols = []
    for (_, b) in hidden:
        bb = b.reshape(-1)
        cols.append(jnp.pad(bb, (0, max_out - bb.shape[0])))
    bh = jnp.concatenate([bm.reshape(-1), bs.reshape(-1)])
    cols.append(jnp.pad(bh, (0, max_out - bh.shape[0])))
    b_packed = jnp.stack(cols, axis=1)           # (max_out, n_hidden + 1)

    flat_inputs = [x_t] + w_ts + [wh_t, b_packed]

    def _col_spec(arr):
        return pl.BlockSpec((arr.shape[0], tile_b), lambda i: (0, i))

    def _resident_spec(arr):
        # Full-array block with constant index -> stays VMEM-resident.
        return pl.BlockSpec(arr.shape, lambda i: (0, 0))

    in_specs = [_col_spec(x_t)] + [_resident_spec(a) for a in flat_inputs[1:]]
    out_spec = pl.BlockSpec((2 * d_out, tile_b), lambda i: (0, i))

    y = pl.pallas_call(
        _make_kernel(hidden_sizes, d_out),
        out_shape=jax.ShapeDtypeStruct((2 * d_out, bp), jnp.float32),
        grid=(n_tiles,),
        in_specs=in_specs,
        out_specs=out_spec,
        compiler_params=pltpu.CompilerParams(
            dimension_semantics=("parallel",),
            vmem_limit_bytes=32 * 1024 * 1024),
    )(*flat_inputs)

    mean = y[:d_out, :batch].T.reshape(lead + (d_out,))
    log_std = y[d_out:, :batch].T.reshape(lead + (d_out,))
    return mean, log_std


# ---------------------------------------------------------------------------
# Pure-JAX references for sanity checking.
# ---------------------------------------------------------------------------
def _reference_forward_f32(params, observation, action):
    x = jnp.concatenate([observation, action], axis=-1).astype(jnp.float32)
    for (w, b) in params["hidden"]:
        x = jnp.maximum(x @ w + b, 0.0)
    wm, bm = params["mean"]
    ws, bs = params["log_std"]
    mean = x @ wm + bm
    log_std = jnp.clip(x @ ws + bs, -20.0, 2.0)
    return mean, log_std


def _reference_forward_bf16(params, observation, action):
    """Mirrors the kernel's mixed precision (bf16 operands, f32 accumulate)."""
    x = jnp.concatenate([observation, action], axis=-1).astype(jnp.bfloat16)
    for (w, b) in params["hidden"]:
        z = jnp.dot(x, w.astype(jnp.bfloat16),
                    preferred_element_type=jnp.float32) + b
        x = jnp.maximum(z, 0.0).astype(jnp.bfloat16)
    wm, bm = params["mean"]
    ws, bs = params["log_std"]
    mean = jnp.dot(x, wm.astype(jnp.bfloat16),
                   preferred_element_type=jnp.float32) + bm
    log_std = jnp.clip(jnp.dot(x, ws.astype(jnp.bfloat16),
                               preferred_element_type=jnp.float32) + bs,
                       -20.0, 2.0)
    return mean, log_std


if __name__ == "__main__":
    key = jax.random.PRNGKey(0)

    obs_dim = 12
    act_simple_dim = 4
    hidden_sizes = [32, 32]
    act_complex_dim = 8

    kp, ko, ka, ko2, ka2 = jax.random.split(key, 5)
    params = init_transfer_function_params(kp, obs_dim, act_simple_dim,
                                           hidden_sizes, act_complex_dim)

    # Case 1: small batch.
    batch = 8
    observation = jax.random.normal(ko, (batch, obs_dim), dtype=jnp.float32)
    action = jax.random.normal(ka, (batch, act_simple_dim), dtype=jnp.float32)

    mean, log_std = transfer_function_forward(params, observation, action)
    jax.block_until_ready((mean, log_std))
    assert mean.shape == (batch, act_complex_dim)
    assert log_std.shape == (batch, act_complex_dim)

    rm, rl = _reference_forward_bf16(params, observation, action)
    assert jnp.allclose(mean, rm, atol=2e-3, rtol=2e-3)
    assert jnp.allclose(log_std, rl, atol=2e-3, rtol=2e-3)

    fm, fl = _reference_forward_f32(params, observation, action)
    assert jnp.allclose(mean, fm, atol=0.25, rtol=0.1)      # bf16 vs f32, loose
    assert jnp.allclose(log_std, fl, atol=0.25, rtol=0.1)

    # Case 2: awkward batch -> exercises zero-padding and a 2-step grid.
    batch2 = 260
    observation2 = jax.random.normal(ko2, (batch2, obs_dim), dtype=jnp.float32)
    action2 = jax.random.normal(ka2, (batch2, act_simple_dim), dtype=jnp.float32)
    m2, l2 = transfer_function_forward(params, observation2, action2)
    jax.block_until_ready((m2, l2))
    assert m2.shape == (batch2, act_complex_dim)
    rm2, rl2 = _reference_forward_bf16(params, observation2, action2)
    assert jnp.allclose(m2, rm2, atol=2e-3, rtol=2e-3)
    assert jnp.allclose(l2, rl2, atol=2e-3, rtol=2e-3)

    print("KERNEL_OK")
</pallas_src>

<mosaic_0001>
module attributes {stable_mosaic.version = 11 : i64} {
  func.func @kernel(%arg0: i32, %arg1: memref<16x128xbf16, #tpu.memory_space<vmem>>, %arg2: memref<32x16xbf16, #tpu.memory_space<vmem>>, %arg3: memref<32x32xbf16, #tpu.memory_space<vmem>>, %arg4: memref<16x32xbf16, #tpu.memory_space<vmem>>, %arg5: memref<32x3xf32, #tpu.memory_space<vmem>>, %arg6: memref<16x128xf32, #tpu.memory_space<vmem>>) attributes {dimension_semantics = [#tpu.dimension_semantics<parallel>], iteration_bounds = array<i64: 1>, scalar_prefetch = 0 : i64, scratch_operands = 0 : i64, tpu.core_type = #tpu.core_type<tc>, window_params = [{transform_indices = @transform_0, window_bounds = array<i64: 16, 128>}, {pipeline_mode = #tpu.pipeline_mode<synchronous>, transform_indices = @transform_1, window_bounds = array<i64: 32, 16>}, {pipeline_mode = #tpu.pipeline_mode<synchronous>, transform_indices = @transform_2, window_bounds = array<i64: 32, 32>}, {pipeline_mode = #tpu.pipeline_mode<synchronous>, transform_indices = @transform_3, window_bounds = array<i64: 16, 32>}, {pipeline_mode = #tpu.pipeline_mode<synchronous>, transform_indices = @transform_4, window_bounds = array<i64: 32, 3>}, {transform_indices = @transform_5, window_bounds = array<i64: 16, 128>}]} {
    %c0 = arith.constant 0 : index
    %c0_0 = arith.constant 0 : index
    %0 = vector.load %arg1[%c0, %c0_0] : memref<16x128xbf16, #tpu.memory_space<vmem>>, vector<16x128xbf16>
    %c0_1 = arith.constant 0 : index
    %c0_2 = arith.constant 0 : index
    %1 = vector.load %arg2[%c0_1, %c0_2] : memref<32x16xbf16, #tpu.memory_space<vmem>>, vector<32x16xbf16>
    %cst = arith.constant dense<0.000000e+00> : vector<32x128xf32>
    %2 = tpu.matmul %1, %0, %cst {dimension_numbers = #tpu.dot_dimension_numbers<[1], [0], [0], [1], [0, 0, 1, 1], [], []>} : vector<32x16xbf16>, vector<16x128xbf16>, vector<32x128xf32> -> vector<32x128xf32>
    %c0_3 = arith.constant 0 : index
    %c0_4 = arith.constant 0 : index
    %3 = vector.load %arg5[%c0_3, %c0_4] : memref<32x3xf32, #tpu.memory_space<vmem>>, vector<32x1xf32>
    %4 = vector.broadcast %3 : vector<32x1xf32> to vector<32x128xf32>
    %5 = arith.addf %2, %4 : vector<32x128xf32>
    %cst_5 = arith.constant 0.000000e+00 : f32
    %6 = vector.broadcast %cst_5 : f32 to vector<32x128xf32>
    %7 = arith.maximumf %5, %6 : vector<32x128xf32>
    %8 = arith.truncf %7 : vector<32x128xf32> to vector<32x128xbf16>
    %c0_6 = arith.constant 0 : index
    %c0_7 = arith.constant 0 : index
    %9 = vector.load %arg3[%c0_6, %c0_7] : memref<32x32xbf16, #tpu.memory_space<vmem>>, vector<32x32xbf16>
    %cst_8 = arith.constant dense<0.000000e+00> : vector<32x128xf32>
    %10 = tpu.matmul %9, %8, %cst_8 {dimension_numbers = #tpu.dot_dimension_numbers<[1], [0], [0], [1], [0, 0, 1, 1], [], []>} : vector<32x32xbf16>, vector<32x128xbf16>, vector<32x128xf32> -> vector<32x128xf32>
    %c0_9 = arith.constant 0 : index
    %c1 = arith.constant 1 : index
    %11 = vector.load %arg5[%c0_9, %c1] : memref<32x3xf32, #tpu.memory_space<vmem>>, vector<32x1xf32>
    %12 = vector.broadcast %11 : vector<32x1xf32> to vector<32x128xf32>
    %13 = arith.addf %10, %12 : vector<32x128xf32>
    %cst_10 = arith.constant 0.000000e+00 : f32
    %14 = vector.broadcast %cst_10 : f32 to vector<32x128xf32>
    %15 = arith.maximumf %13, %14 : vector<32x128xf32>
    %16 = arith.truncf %15 : vector<32x128xf32> to vector<32x128xbf16>
    %c0_11 = arith.constant 0 : index
    %c0_12 = arith.constant 0 : index
    %17 = vector.load %arg4[%c0_11, %c0_12] : memref<16x32xbf16, #tpu.memory_space<vmem>>, vector<16x32xbf16>
    %cst_13 = arith.constant dense<0.000000e+00> : vector<16x128xf32>
    %18 = tpu.matmul %17, %16, %cst_13 {dimension_numbers = #tpu.dot_dimension_numbers<[1], [0], [0], [1], [0, 0, 1, 1], [], []>} : vector<16x32xbf16>, vector<32x128xbf16>, vector<16x128xf32> -> vector<16x128xf32>
    %c0_14 = arith.constant 0 : index
    %c2 = arith.constant 2 : index
    %19 = vector.load %arg5[%c0_14, %c2] : memref<32x3xf32, #tpu.memory_space<vmem>>, vector<16x1xf32>
    %20 = vector.broadcast %19 : vector<16x1xf32> to vector<16x128xf32>
    %21 = arith.addf %18, %20 : vector<16x128xf32>
    %22 = tpu.iota {dimensions = array<i32: 0>} : vector<16x1xi32>
    %c8_i32 = arith.constant 8 : i32
    %23 = vector.broadcast %c8_i32 : i32 to vector<16x1xi32>
    %24 = arith.cmpi slt, %22, %23 : vector<16x1xi32>
    %cst_15 = arith.constant -2.000000e+01 : f32
    %cst_16 = arith.constant 2.000000e+00 : f32
    %25 = vector.broadcast %cst_15 : f32 to vector<16x128xf32>
    %26 = arith.maximumf %25, %21 : vector<16x128xf32>
    %27 = vector.broadcast %cst_16 : f32 to vector<16x128xf32>
    %28 = arith.minimumf %27, %26 : vector<16x128xf32>
    %29 = vector.shape_cast %24 : vector<16x1xi1> to vector<16x1xi1>
    %30 = vector.broadcast %29 : vector<16x1xi1> to vector<16x128xi1>
    %31 = arith.select %30, %21, %28 : vector<16x128xi1>, vector<16x128xf32>
    %c0_17 = arith.constant 0 : index
    %c0_18 = arith.constant 0 : index
    %32 = vector.load %arg6[%c0_17, %c0_18] : memref<16x128xf32, #tpu.memory_space<vmem>>, vector<16x128xf32>
    tpu.vector_store %arg6[%c0_17, %c0_18], %31 {strides = array<i32>} : memref<16x128xf32, #tpu.memory_space<vmem>>, vector<16x128xf32>,
    return
  }
  func.func @transform_0(%arg0: i32) -> (i32, i32) {
    %c0_i32 = arith.constant 0 : i32
    %c0_i32_0 = arith.constant 0 : i32
    return %c0_i32, %arg0 : i32, i32
  }
  func.func @transform_1(%arg0: i32) -> (i32, i32) {
    %c0_i32 = arith.constant 0 : i32
    %c0_i32_0 = arith.constant 0 : i32
    %c0_i32_1 = arith.constant 0 : i32
    return %c0_i32, %c0_i32_0 : i32, i32
  }
  func.func @transform_2(%arg0: i32) -> (i32, i32) {
    %c0_i32 = arith.constant 0 : i32
    %c0_i32_0 = arith.constant 0 : i32
    %c0_i32_1 = arith.constant 0 : i32
    return %c0_i32, %c0_i32_0 : i32, i32
  }
  func.func @transform_3(%arg0: i32) -> (i32, i32) {
    %c0_i32 = arith.constant 0 : i32
    %c0_i32_0 = arith.constant 0 : i32
    %c0_i32_1 = arith.constant 0 : i32
    return %c0_i32, %c0_i32_0 : i32, i32
  }
  func.func @transform_4(%arg0: i32) -> (i32, i32) {
    %c0_i32 = arith.constant 0 : i32
    %c0_i32_0 = arith.constant 0 : i32
    %c0_i32_1 = arith.constant 0 : i32
    return %c0_i32, %c0_i32_0 : i32, i32
  }
  func.func @transform_5(%arg0: i32) -> (i32, i32) {
    %c0_i32 = arith.constant 0 : i32
    %c0_i32_0 = arith.constant 0 : i32
    return %c0_i32, %arg0 : i32, i32
  }
}

</mosaic_0001>

<llo_original>
// kernel: tpu_custom_call.1
$region0: #{tpu_custom_call.1}
  #allocation0 [shape = 'u32[]', space=smem, size = 0x4, offset = 0x4, fixed_abs, tag = 'smem constant byte address 0x4 - core index']
  #allocation1 [shape = 'u32[144,128]{1,0:T(1,128)}', space=vmem, size = 0x12000, scoped, tag = 'internal scratch']
  %s0 = inlined_call_operand.vmem [shape: bf16[16,128], index: 0, kind: input, shape index: {}]
  %s1 = inlined_call_operand.vmem [shape: bf16[32,16], index: 1, kind: input, shape index: {}]
  %s2 = inlined_call_operand.vmem [shape: bf16[32,32], index: 2, kind: input, shape index: {}]
  %s3 = inlined_call_operand.vmem [shape: bf16[16,32], index: 3, kind: input, shape index: {}]
  %s4 = inlined_call_operand.vmem [shape: f32[32,3], index: 4, kind: input, shape index: {}]
  %s5 = inlined_call_operand.hbm [shape: f32[16,128], index: 5, kind: output, shape index: {}]
  %s6 = sld [smem:[#allocation0]]
  $region30: #{tpu_custom_call.1} parent=0
    _
  %s8 = ssub.s32 1, %s6
  %s9 = scalar_select 0, %s8, %s6
  $region1: #{tpu_custom_call.1} parent=0
    #allocation2 [shape = 'u8[8192]{0}', space=vmem, size = 0x2000, scoped, tag = 'output window, operand 0, single buffered']
    #allocation3 [shape = 's32[1]{0}', space=sflag, size = 0x4, scoped, tag = 'scoped memory for tpu_custom_call.1']
    %10 = vsyncpa [#allocation3], 0
    // Predicated region
    $region2: #{tpu_custom_call.1} parent=1 // pred_check
      _
    $region3: #{tpu_custom_call.1} parent=1 // pred_check_branch
      %12 = sbr.rel (0) target = $region5
    $region4: #{tpu_custom_call.1} parent=1 // pred_region
      _
    $region5: #{tpu_custom_call.1} parent=1 // pred_fallthru
      _
    // Predicated region
    $region6: #{tpu_custom_call.1} parent=1 // pred_check
      _
    $region7: #{tpu_custom_call.1} parent=1 // pred_check_branch
      %14 = sbr.rel (0) target = $region9
    $region8: #{tpu_custom_call.1} parent=1 // pred_region
      _
    $region9: #{tpu_custom_call.1} parent=1 // pred_fallthru
      _
    // Predicated region
    $region10: #{tpu_custom_call.1} parent=1 // pred_check
      _
    $region11: #{tpu_custom_call.1} parent=1 // pred_check_branch
      %16 = sbr.rel (0) target = $region13
    $region12: #{tpu_custom_call.1} parent=1 // pred_region
      _
    $region13: #{tpu_custom_call.1} parent=1 // pred_fallthru
      _
    // Predicated region
    $region14: #{tpu_custom_call.1} parent=1 // pred_check
      _
    $region15: #{tpu_custom_call.1} parent=1 // pred_check_branch
      %18 = sbr.rel (0) target = $region17
    $region16: #{tpu_custom_call.1} parent=1 // pred_region
      _
    $region17: #{tpu_custom_call.1} parent=1 // pred_fallthru
      _
    // Predicated region
    $region18: #{tpu_custom_call.1} parent=1 // pred_check
      _
    $region19: #{tpu_custom_call.1} parent=1 // pred_check_branch
      %20 = sbr.rel (0) target = $region21
    $region20: #{tpu_custom_call.1} parent=1 // pred_region
      _
    $region21: #{tpu_custom_call.1} parent=1 // pred_fallthru
      _
    %v22 = vld [vmem:[%s0] sm:$0xf]
    %v23 = vld [vmem:[%s0 + $0x4] sm:$0xf]
    %v24 = vld [vmem:[%s1] sm:$0xf]
    %v25 = vld [vmem:[%s1 + $0x4] sm:$0xf]
    %v26 = vld [vmem:[%s1 + $0x8] sm:$0xf]
    %v27 = vld [vmem:[%s1 + $0xc] sm:$0xf]
    %v28 = vld [vmem:[%s4] sm:$0xff]
    %v29 = vld [vmem:[%s4 + $0x8] sm:$0xff]
    %v30 = vld [vmem:[%s4 + $0x10] sm:$0xff]
    %v31 = vld [vmem:[%s4 + $0x18] sm:$0xff]
    %33 = vset.pattern.permute.xlu0 0
    %34 = vperm.xlu0 %33, %v28
    %v35 = vpop.permute.xlu0 %34
    %38 = vset.pattern.permute.xlu0 0
    %39 = vperm.xlu0 %38, %v29
    %v40 = vpop.permute.xlu0 %39
    %43 = vset.pattern.permute.xlu0 0
    %44 = vperm.xlu0 %43, %v30
    %v45 = vpop.permute.xlu0 %44
    %48 = vset.pattern.permute.xlu0 0
    %49 = vperm.xlu0 %48, %v31
    %v50 = vpop.permute.xlu0 %49
    %v56 = vunpack.c.l.b16 %v24
    %v57 = vunpack.c.l.b16 %v25
    %v58 = vunpack.c.l.b16 %v26
    %v59 = vunpack.c.l.b16 %v27
    %v60 = vpack.c.b16 %v57, %v56
    %v61 = vpack.c.b16 %v59, %v58
    %v64 = vunpack.c.l.b16 %v22
    %v65 = vunpack.c.l.b16 %v23
    %v66 = vpack.c.b16 %v65, %v64
    %vm68 = vcmask 130048
    %v70 = vsel %vm68, %v60, 0
    %v73 = vsel %vm68, %v61, 0
    %75 = vmatprep.subr.bf16.mxu0 0
    %76 = vmatpush1.bf16.msra.mxu0 %v66
    %77 = vmatprep.subr.bf16.mxu0 0
    %78 = vmatpush1.bf16.msra.mxu0 0
    %79 = vmatprep.subr.bf16.mxu0 0
    %80 = vmatpush1.bf16.msra.mxu0 0
    %81 = vmatprep.subr.bf16.mxu0 0
    %82 = vmatpush1.bf16.msra.mxu0 0
    %83 = vmatprep.subr.bf16.mxu0 0
    %84 = vmatpush1.bf16.msra.mxu0 0
    %85 = vmatprep.subr.bf16.mxu0 0
    %86 = vmatpush1.bf16.msra.mxu0 0
    %87 = vmatprep.subr.bf16.mxu0 0
    %88 = vmatpush1.bf16.msra.mxu0 0
    %89 = vmatprep.subr.bf16.mxu0 0
    %90 = vmatpush1.bf16.msra.mxu0 0
    %91 = vmatprep.subr.bf16.mxu0 0
    %92 = vmatpush1.bf16.msra.mxu0 0
    %93 = vmatprep.subr.bf16.mxu0 0
    %94 = vmatpush1.bf16.msra.mxu0 0
    %95 = vmatprep.subr.bf16.mxu0 0
    %96 = vmatpush1.bf16.msra.mxu0 0
    %97 = vmatprep.subr.bf16.mxu0 0
    %98 = vmatpush1.bf16.msra.mxu0 0
    %99 = vmatprep.subr.bf16.mxu0 0
    %100 = vmatpush1.bf16.msra.mxu0 0
    %101 = vmatprep.subr.bf16.mxu0 0
    %102 = vmatpush1.bf16.msra.mxu0 0
    %103 = vmatprep.subr.bf16.mxu0 0
    %104 = vmatpush1.bf16.msra.mxu0 0
    %105 = vmatprep.subr.bf16.mxu0 0
    %106 = vmatpush1.bf16.msra.mxu0 0
    %107 = vmatprep.mubr.bf16.mxu0 0
    %108 = vmatmul.mubr.bf16.gmra.mrb[0].mxu0 %v70
    %v109 = vpop.f32.mrb[0].mxu0
    %v110 = vadd.f32 %v35, %v109
    %v111 = vpop.f32.mrb[0].mxu0
    %v112 = vpop.f32.mrb[0].mxu0
    %v113 = vadd.f32 %v40, %v112
    %v114 = vpop.f32.mrb[0].mxu0
    %115 = vmatprep.mubr.bf16.mxu0 0
    %116 = vmatmul.mubr.bf16.gmra.mrb[0].mxu0 %v73
    %v117 = vpop.f32.mrb[0].mxu0
    %v118 = vadd.f32 %v45, %v117
    %v119 = vpop.f32.mrb[0].mxu0
    %v120 = vpop.f32.mrb[0].mxu0
    %v121 = vadd.f32 %v50, %v120
    %v122 = vpop.f32.mrb[0].mxu0
    %123 = vdwg.mxu0
    %v124 = vmax.f32 %v110, 0.0
    %v125 = vmax.f32 %v113, 0.0
    %v126 = vmax.f32 %v118, 0.0
    %v127 = vmax.f32 %v121, 0.0
    %v128 = vpack.c.bf16 %v125, %v124
    %v129 = vpack.c.bf16 %v127, %v126
    %v130 = vld [vmem:[%s2] sm:$0xf]
    %v131 = vld [vmem:[%s2 + $0x4] sm:$0xf]
    %v132 = vld [vmem:[%s2 + $0x8] sm:$0xf]
    %v133 = vld [vmem:[%s2 + $0xc] sm:$0xf]
    %134 = vset.pattern.permute.xlu0 1
    %135 = vperm.xlu0 %134, %v28
    %v136 = vpop.permute.xlu0 %135
    %138 = vset.pattern.permute.xlu0 1
    %139 = vperm.xlu0 %138, %v29
    %v140 = vpop.permute.xlu0 %139
    %142 = vset.pattern.permute.xlu0 1
    %143 = vperm.xlu0 %142, %v30
    %v144 = vpop.permute.xlu0 %143
    %146 = vset.pattern.permute.xlu0 1
    %147 = vperm.xlu0 %146, %v31
    %v148 = vpop.permute.xlu0 %147
    %v154 = vunpack.c.l.b16 %v130
    %v155 = vunpack.c.l.b16 %v131
    %v156 = vunpack.c.l.b16 %v132
    %v157 = vunpack.c.l.b16 %v133
    %v158 = vpack.c.b16 %v155, %v154
    %v159 = vpack.c.b16 %v157, %v156
    %vm160 = vcmask 261120
    %v162 = vsel %vm160, %v158, 0
    %v165 = vsel %vm160, %v159, 0
    %167 = vmatprep.subr.bf16.mxu0 0
    %168 = vmatpush1.bf16.msra.mxu0 %v128
    %169 = vmatprep.subr.bf16.mxu0 0
    %170 = vmatpush1.bf16.msra.mxu0 %v129
    %171 = vmatprep.subr.bf16.mxu0 0
    %172 = vmatpush1.bf16.msra.mxu0 0
    %173 = vmatprep.subr.bf16.mxu0 0
    %174 = vmatpush1.bf16.msra.mxu0 0
    %175 = vmatprep.subr.bf16.mxu0 0
    %176 = vmatpush1.bf16.msra.mxu0 0
    %177 = vmatprep.subr.bf16.mxu0 0
    %178 = vmatpush1.bf16.msra.mxu0 0
    %179 = vmatprep.subr.bf16.mxu0 0
    %180 = vmatpush1.bf16.msra.mxu0 0
    %181 = vmatprep.subr.bf16.mxu0 0
    %182 = vmatpush1.bf16.msra.mxu0 0
    %183 = vmatprep.subr.bf16.mxu0 0
    %184 = vmatpush1.bf16.msra.mxu0 0
    %185 = vmatprep.subr.bf16.mxu0 0
    %186 = vmatpush1.bf16.msra.mxu0 0
    %187 = vmatprep.subr.bf16.mxu0 0
    %188 = vmatpush1.bf16.msra.mxu0 0
    %189 = vmatprep.subr.bf16.mxu0 0
    %190 = vmatpush1.bf16.msra.mxu0 0
    %191 = vmatprep.subr.bf16.mxu0 0
    %192 = vmatpush1.bf16.msra.mxu0 0
    %193 = vmatprep.subr.bf16.mxu0 0
    %194 = vmatpush1.bf16.msra.mxu0 0
    %195 = vmatprep.subr.bf16.mxu0 0
    %196 = vmatpush1.bf16.msra.mxu0 0
    %197 = vmatprep.subr.bf16.mxu0 0
    %198 = vmatpush1.bf16.msra.mxu0 0
    %199 = vmatprep.mubr.bf16.mxu0 0
    %200 = vmatmul.mubr.bf16.gmra.mrb[0].mxu0 %v162
    %v201 = vpop.f32.mrb[0].mxu0
    %v202 = vadd.f32 %v136, %v201
    %v203 = vpop.f32.mrb[0].mxu0
    %v204 = vpop.f32.mrb[0].mxu0
    %v205 = vadd.f32 %v140, %v204
    %v206 = vpop.f32.mrb[0].mxu0
    %207 = vmatprep.mubr.bf16.mxu0 0
    %208 = vmatmul.mubr.bf16.gmra.mrb[0].mxu0 %v165
    %v209 = vpop.f32.mrb[0].mxu0
    %v210 = vadd.f32 %v144, %v209
    %v211 = vpop.f32.mrb[0].mxu0
    %v212 = vpop.f32.mrb[0].mxu0
    %v213 = vadd.f32 %v148, %v212
    %v214 = vpop.f32.mrb[0].mxu0
    %215 = vdwg.mxu0
    %v216 = vmax.f32 %v202, 0.0
    %v217 = vmax.f32 %v205, 0.0
    %v218 = vmax.f32 %v210, 0.0
    %v219 = vmax.f32 %v213, 0.0
    %v220 = vpack.c.bf16 %v217, %v216
    %v221 = vpack.c.bf16 %v219, %v218
    %v222 = vld [vmem:[%s3] sm:$0xf]
    %v223 = vld [vmem:[%s3 + $0x4] sm:$0xf]
    %v224 = vld [vmem:[%s4] sm:$0xff]
    %v225 = vld [vmem:[%s4 + $0x8] sm:$0xff]
    %227 = vset.pattern.permute.xlu0 2
    %228 = vperm.xlu0 %227, %v224
    %v229 = vpop.permute.xlu0 %228
    %232 = vset.pattern.permute.xlu0 2
    %233 = vperm.xlu0 %232, %v225
    %v234 = vpop.permute.xlu0 %233
    %v238 = vunpack.c.l.b16 %v222
    %v239 = vunpack.c.l.b16 %v223
    %v240 = vpack.c.b16 %v239, %v238
    %v242 = vsel %vm160, %v240, 0
    %244 = vmatprep.subr.bf16.mxu0 0
    %245 = vmatpush1.bf16.msra.mxu0 %v220
    %246 = vmatprep.subr.bf16.mxu0 0
    %247 = vmatpush1.bf16.msra.mxu0 %v221
    %248 = vmatprep.subr.bf16.mxu0 0
    %249 = vmatpush1.bf16.msra.mxu0 0
    %250 = vmatprep.subr.bf16.mxu0 0
    %251 = vmatpush1.bf16.msra.mxu0 0
    %252 = vmatprep.subr.bf16.mxu0 0
    %253 = vmatpush1.bf16.msra.mxu0 0
    %254 = vmatprep.subr.bf16.mxu0 0
    %255 = vmatpush1.bf16.msra.mxu0 0
    %256 = vmatprep.subr.bf16.mxu0 0
    %257 = vmatpush1.bf16.msra.mxu0 0
    %258 = vmatprep.subr.bf16.mxu0 0
    %259 = vmatpush1.bf16.msra.mxu0 0
    %260 = vmatprep.subr.bf16.mxu0 0
    %261 = vmatpush1.bf16.msra.mxu0 0
    %262 = vmatprep.subr.bf16.mxu0 0
    %263 = vmatpush1.bf16.msra.mxu0 0
    %264 = vmatprep.subr.bf16.mxu0 0
    %265 = vmatpush1.bf16.msra.mxu0 0
    %266 = vmatprep.subr.bf16.mxu0 0
    %267 = vmatpush1.bf16.msra.mxu0 0
    %268 = vmatprep.subr.bf16.mxu0 0
    %269 = vmatpush1.bf16.msra.mxu0 0
    %270 = vmatprep.subr.bf16.mxu0 0
    %271 = vmatpush1.bf16.msra.mxu0 0
    %272 = vmatprep.subr.bf16.mxu0 0
    %273 = vmatpush1.bf16.msra.mxu0 0
    %274 = vmatprep.subr.bf16.mxu0 0
    %275 = vmatpush1.bf16.msra.mxu0 0
    %276 = vmatprep.mubr.bf16.mxu0 0
    %277 = vmatmul.mubr.bf16.gmra.mrb[0].mxu0 %v242
    %v278 = vpop.f32.mrb[0].mxu0
    %v279 = vadd.f32 %v229, %v278
    %v280 = vpop.f32.mrb[0].mxu0
    %v281 = vpop.f32.mrb[0].mxu0
    %v282 = vadd.f32 %v234, %v281
    %v283 = vpop.f32.mrb[0].mxu0
    %284 = vdwg.mxu0
    %v285 = vlaneseq
    %v286 = vshrl.u32 %v285, 7
    %v287 = vadd.s32 %v286, 8
    %vm288 = vcmp.lt.s32.totalorder %v286, 8
    %vm289 = vcmp.lt.s32.totalorder %v287, 8
    %v290 = vmax.f32 %v279, -20.0
    %v291 = vmax.f32 %v282, -20.0
    %v292 = vmin.f32 %v290, 2.0
    %v293 = vmin.f32 %v291, 2.0
    %v294 = vsel %vm288, 1, 0
    %v295 = vsel %vm289, 1, 0
    %vm296 = vcmp.eq.s32.totalorder %v294, 1
    %vm297 = vcmp.eq.s32.totalorder %v295, 1
    %v298 = vsel %vm296, %v279, %v292
    %v299 = vsel %vm297, %v282, %v293
    %300 = vst [vmem:[#allocation2] sm:$0xff] %v298
    %301 = vst [vmem:[#allocation2 + $0x8] sm:$0xff] %v299
    // Predicated region
    $region22: #{tpu_custom_call.1} parent=1 // pred_check
      _
    $region23: #{tpu_custom_call.1} parent=1 // pred_check_branch
      %303 = sbr.rel (0) target = $region25
    $region24: #{tpu_custom_call.1} parent=1 // pred_region
      %s305 = ssub.s32 256, 256
      %306 = vsyncadd [#allocation3], %s305
      %s307 = sshll.u32 [#allocation2], 4
      %s308 = int_to_ptr.vmem [resolvable:$true] %s307
      %313 = dma.vmem_to_hbm [thread:$0]  %s308, 256, %s5, [#allocation3], 128, 128, 8
    $region25: #{tpu_custom_call.1} parent=1 // pred_fallthru
      _
    // Predicated region
    $region26: #{tpu_custom_call.1} parent=1 // pred_check
      _
    $region27: #{tpu_custom_call.1} parent=1 // pred_check_branch
      %315 = sbr.rel (0) target = $region29
    $region28: #{tpu_custom_call.1} parent=1 // pred_region
      %316 = dma.done [#allocation3], 256
    $region29: #{tpu_custom_call.1} parent=1 // pred_fallthru
      _
    %317 = vsyncpa [#allocation3], 1

</llo_original>
